<compile_context>
chip_gen: v6e
topology: v6e:2x2x1
jax: 0.10.0
libtpu: 0.0.40
codegen_flags: <defaults>
</compile_context>

<pallas_src>
import jax
import jax.numpy as jnp
from jax.experimental import pallas as pl
from jax.experimental.pallas import tpu as pltpu


def linear_sigmoid_kernel(w_ref, b_ref, x_ref, o_ref):
    # w_ref: [2, 2] f32 in SMEM (PyTorch layout: [out_features, in_features])
    # b_ref: [2]    f32 in SMEM
    # x_ref: [2, block_n] f32 in VMEM (features on sublanes, batch on lanes)
    # o_ref: [2, block_n] f32 in VMEM
    x0 = x_ref[0:1, :]                      # [1, block_n]
    x1 = x_ref[1:2, :]                      # [1, block_n]
    # y_j = w[j,0]*x0 + w[j,1]*x1 + b[j]  — scalar-broadcast VPU multiply-adds.
    y0 = x0 * w_ref[0, 0] + x1 * w_ref[0, 1] + b_ref[0]
    y1 = x0 * w_ref[1, 0] + x1 * w_ref[1, 1] + b_ref[1]
    o_ref[0:1, :] = jax.nn.sigmoid(y0)      # EUP
    o_ref[1:2, :] = jax.nn.sigmoid(y1)


def and_or_model(x, weight, bias, *, block_n=2048):
    """Forward of AndOrModel: sigmoid(Linear(2, 2)(x)).

    x:      [N, 2] float32
    weight: [2, 2] float32  (PyTorch layout: [out_features, in_features])
    bias:   [2]    float32
    block_n: lane-axis tile size (rows of the batch per grid step); must be a
             multiple of 128 when more than one block is used.  2048 keeps
             double-buffered tiles (~64 KiB) far under the v7x 32 MiB scoped
             VMEM budget while being big enough to track the HBM roofline.
    """
    n, f_in = x.shape
    f_out = weight.shape[0]

    # Wrapper-side glue: lane-dense layout (batch on the 128-lane axis).
    x_t = x.T                                # [f_in, n]

    if n <= block_n:
        # Small-N path (e.g. the 4-row truth table): a single full-array block,
        # one grid step — launch overhead dominates, so no extra structure.
        block = n
        padded_n = n
    else:
        block = block_n
        padded_n = pl.cdiv(n, block) * block
        if padded_n != n:
            x_t = jnp.pad(x_t, ((0, 0), (0, padded_n - n)))

    grid = (padded_n // block,)

    out_t = pl.pallas_call(
        linear_sigmoid_kernel,
        out_shape=jax.ShapeDtypeStruct((f_out, padded_n), jnp.float32),
        grid=grid,
        in_specs=[
            # 4 + 2 scalars: keep them in SMEM, not padded VMEM vregs.
            pl.BlockSpec(memory_space=pltpu.MemorySpace.SMEM),   # weight
            pl.BlockSpec(memory_space=pltpu.MemorySpace.SMEM),   # bias
            pl.BlockSpec((f_in, block), lambda i: (0, i)),       # x_t (VMEM)
        ],
        out_specs=pl.BlockSpec((f_out, block), lambda i: (0, i)),
        compiler_params=pltpu.CompilerParams(
            dimension_semantics=("parallel",)),   # megacore-shard the batch
    )(weight, bias, x_t)

    return out_t[:, :n].T                    # back to [N, f_out]


if __name__ == "__main__":
    key = jax.random.PRNGKey(0)
    k_w, k_b, k_x = jax.random.split(key, 3)

    # nn.Linear(2, 2): weight [2, 2], bias [2]; PyTorch-style uniform init
    # bound = 1/sqrt(in_features), deterministically seeded.
    bound = 1.0 / jnp.sqrt(2.0)
    weight = jax.random.uniform(k_w, (2, 2), jnp.float32, -bound, bound)
    bias = jax.random.uniform(k_b, (2,), jnp.float32, -bound, bound)

    # 1) Canonical AND/OR truth-table input (small-N, single-block path).
    x_small = jnp.array([[0.0, 0.0], [0.0, 1.0], [1.0, 0.0], [1.0, 1.0]],
                        dtype=jnp.float32)
    out_small = jax.block_until_ready(and_or_model(x_small, weight, bias))
    ref_small = jax.nn.sigmoid(x_small @ weight.T + bias)
    assert out_small.shape == (4, 2)
    assert jnp.allclose(out_small, ref_small, atol=1e-5), (out_small, ref_small)

    # 2) Ragged larger batch to exercise the tiled / padded / parallel-grid path.
    x_big = jax.random.uniform(k_x, (300, 2), jnp.float32)
    out_big = jax.block_until_ready(
        and_or_model(x_big, weight, bias, block_n=128))
    ref_big = jax.nn.sigmoid(x_big @ weight.T + bias)
    assert out_big.shape == (300, 2)
    assert jnp.allclose(out_big, ref_big, atol=1e-5), (out_big, ref_big)

    print("KERNEL_OK")
</pallas_src>

<mosaic_0001>
module attributes {stable_mosaic.version = 11 : i64} {
  func.func @linear_sigmoid_kernel(%arg0: i32, %arg1: memref<2x2xf32, #tpu.memory_space<smem>>, %arg2: memref<2xf32, #tpu.memory_space<smem>>, %arg3: memref<2x4xf32, #tpu.memory_space<vmem>>, %arg4: memref<2x4xf32, #tpu.memory_space<vmem>>) attributes {dimension_semantics = [#tpu.dimension_semantics<parallel>], iteration_bounds = array<i64: 1>, scalar_prefetch = 0 : i64, scratch_operands = 0 : i64, tpu.core_type = #tpu.core_type<tc>, window_params = [{transform_indices = @transform_0, window_bounds = array<i64: 2, 2>}, {transform_indices = @transform_1, window_bounds = array<i64: 2>}, {transform_indices = @transform_2, window_bounds = array<i64: 2, 4>}, {transform_indices = @transform_3, window_bounds = array<i64: 2, 4>}]} {
    %c0 = arith.constant 0 : index
    %c0_0 = arith.constant 0 : index
    %0 = vector.load %arg3[%c0, %c0_0] : memref<2x4xf32, #tpu.memory_space<vmem>>, vector<1x4xf32>
    %c1 = arith.constant 1 : index
    %c0_1 = arith.constant 0 : index
    %1 = vector.load %arg3[%c1, %c0_1] : memref<2x4xf32, #tpu.memory_space<vmem>>, vector<1x4xf32>
    %c0_2 = arith.constant 0 : index
    %c0_3 = arith.constant 0 : index
    %2 = memref.load %arg1[%c0_2, %c0_3] : memref<2x2xf32, #tpu.memory_space<smem>>
    %3 = vector.broadcast %2 : f32 to vector<1x4xf32>
    %4 = arith.mulf %0, %3 : vector<1x4xf32>
    %c0_4 = arith.constant 0 : index
    %c1_5 = arith.constant 1 : index
    %5 = memref.load %arg1[%c0_4, %c1_5] : memref<2x2xf32, #tpu.memory_space<smem>>
    %6 = vector.broadcast %5 : f32 to vector<1x4xf32>
    %7 = arith.mulf %1, %6 : vector<1x4xf32>
    %8 = arith.addf %4, %7 : vector<1x4xf32>
    %c0_6 = arith.constant 0 : index
    %9 = memref.load %arg2[%c0_6] : memref<2xf32, #tpu.memory_space<smem>>
    %10 = vector.broadcast %9 : f32 to vector<1x4xf32>
    %11 = arith.addf %8, %10 : vector<1x4xf32>
    %c1_7 = arith.constant 1 : index
    %c0_8 = arith.constant 0 : index
    %12 = memref.load %arg1[%c1_7, %c0_8] : memref<2x2xf32, #tpu.memory_space<smem>>
    %13 = vector.broadcast %12 : f32 to vector<1x4xf32>
    %14 = arith.mulf %0, %13 : vector<1x4xf32>
    %c1_9 = arith.constant 1 : index
    %c1_10 = arith.constant 1 : index
    %15 = memref.load %arg1[%c1_9, %c1_10] : memref<2x2xf32, #tpu.memory_space<smem>>
    %16 = vector.broadcast %15 : f32 to vector<1x4xf32>
    %17 = arith.mulf %1, %16 : vector<1x4xf32>
    %18 = arith.addf %14, %17 : vector<1x4xf32>
    %c1_11 = arith.constant 1 : index
    %19 = memref.load %arg2[%c1_11] : memref<2xf32, #tpu.memory_space<smem>>
    %20 = vector.broadcast %19 : f32 to vector<1x4xf32>
    %21 = arith.addf %18, %20 : vector<1x4xf32>
    %22 = arith.negf %11 : vector<1x4xf32>
    %23 = math.exp %22 : vector<1x4xf32>
    %cst = arith.constant 1.000000e+00 : f32
    %24 = vector.broadcast %cst : f32 to vector<1x4xf32>
    %25 = arith.addf %24, %23 : vector<1x4xf32>
    %26 = arith.divf %24, %25 : vector<1x4xf32>
    %c0_12 = arith.constant 0 : index
    %c0_13 = arith.constant 0 : index
    %27 = vector.load %arg4[%c0_12, %c0_13] : memref<2x4xf32, #tpu.memory_space<vmem>>, vector<1x4xf32>
    tpu.vector_store %arg4[%c0_12, %c0_13], %26 {strides = array<i32>} : memref<2x4xf32, #tpu.memory_space<vmem>>, vector<1x4xf32>,
    %28 = arith.negf %21 : vector<1x4xf32>
    %29 = math.exp %28 : vector<1x4xf32>
    %cst_14 = arith.constant 1.000000e+00 : f32
    %30 = vector.broadcast %cst_14 : f32 to vector<1x4xf32>
    %31 = arith.addf %30, %29 : vector<1x4xf32>
    %32 = arith.divf %30, %31 : vector<1x4xf32>
    %c1_15 = arith.constant 1 : index
    %c0_16 = arith.constant 0 : index
    %33 = vector.load %arg4[%c1_15, %c0_16] : memref<2x4xf32, #tpu.memory_space<vmem>>, vector<1x4xf32>
    tpu.vector_store %arg4[%c1_15, %c0_16], %32 {strides = array<i32>} : memref<2x4xf32, #tpu.memory_space<vmem>>, vector<1x4xf32>,
    return
  }
  func.func @transform_0(%arg0: i32) -> (i32, i32) {
    %c0_i32 = arith.constant 0 : i32
    %c0_i32_0 = arith.constant 0 : i32
    %c0_i32_1 = arith.constant 0 : i32
    return %c0_i32, %c0_i32_0 : i32, i32
  }
  func.func @transform_1(%arg0: i32) -> i32 {
    %c0_i32 = arith.constant 0 : i32
    %c0_i32_0 = arith.constant 0 : i32
    return %c0_i32 : i32
  }
  func.func @transform_2(%arg0: i32) -> (i32, i32) {
    %c0_i32 = arith.constant 0 : i32
    %c0_i32_0 = arith.constant 0 : i32
    return %c0_i32, %arg0 : i32, i32
  }
  func.func @transform_3(%arg0: i32) -> (i32, i32) {
    %c0_i32 = arith.constant 0 : i32
    %c0_i32_0 = arith.constant 0 : i32
    return %c0_i32, %arg0 : i32, i32
  }
}

</mosaic_0001>

<llo_original>
// kernel: tpu_custom_call.1
$region0: #{tpu_custom_call.1}
  #allocation0 [shape = 'u32[]', space=smem, size = 0x4, offset = 0x4, fixed_abs, tag = 'smem constant byte address 0x4 - core index']
  #allocation1 [shape = 'u32[144,128]{1,0:T(1,128)}', space=vmem, size = 0x12000, scoped, tag = 'internal scratch']
  %s0 = inlined_call_operand.hbm [shape: f32[2,2], index: 0, kind: input, shape index: {}]
  %s1 = inlined_call_operand.vmem [shape: f32[2], index: 1, kind: input, shape index: {}]
  %s2 = inlined_call_operand.vmem [shape: f32[2,4], index: 2, kind: input, shape index: {}]
  %s3 = inlined_call_operand.hbm [shape: f32[2,4], index: 3, kind: output, shape index: {}]
  %s4 = sld [smem:[#allocation0]]
  $region30: #{tpu_custom_call.1} parent=0
    _
  %s6 = ssub.s32 1, %s4
  %s7 = scalar_select 0, %s6, %s4
  $region1: #{tpu_custom_call.1} parent=0
    #allocation2 [shape = 'u8[1024]{0}', space=smem, size = 0x400, scoped, tag = 'input window, operand 0, single buffered']
    #allocation3 [shape = 's32[1]{0}', space=sflag, size = 0x4, scoped, tag = 'scoped memory for tpu_custom_call.1']
    #allocation4 [shape = 's32[1]{0}', space=sflag, size = 0x4, scoped, tag = 'scoped memory for tpu_custom_call.1']
    #allocation5 [shape = 's32[1]{0}', space=sflag, size = 0x4, scoped, tag = 'scoped memory for tpu_custom_call.1']
    #allocation6 [shape = 'u8[512]{0}', space=smem, size = 0x200, scoped, tag = 'input window, operand 1, single buffered']
    #allocation7 [shape = 'u8[1024]{0}', space=vmem, size = 0x400, scoped, tag = 'output window, operand 0, single buffered']
    %8 = vsyncpa [#allocation4], 0
    %9 = vsyncpa [#allocation5], 0
    %10 = vsyncpa [#allocation3], 0
    // Predicated region
    $region2: #{tpu_custom_call.1} parent=1 // pred_check
      _
    $region3: #{tpu_custom_call.1} parent=1 // pred_check_branch
      %12 = sbr.rel (0) target = $region5
    $region4: #{tpu_custom_call.1} parent=1 // pred_region
      %s14 = ssub.s32 32, 32
      %15 = vsyncadd [#allocation4], %s14
      %18 = dma.hbm_to_smem %s0, 32, [#allocation2], [#allocation4]
    $region5: #{tpu_custom_call.1} parent=1 // pred_fallthru
      _
    // Predicated region
    $region6: #{tpu_custom_call.1} parent=1 // pred_check
      _
    $region7: #{tpu_custom_call.1} parent=1 // pred_check_branch
      %20 = sbr.rel (0) target = $region9
    $region8: #{tpu_custom_call.1} parent=1 // pred_region
      %s22 = ssub.s32 16, 16
      %23 = vsyncadd [#allocation5], %s22
      %s25 = sshll.u32 %s1, 4
      %s26 = int_to_ptr.vmem [resolvable:$true] %s25
      %28 = dma.vmem_to_smem %s26, 16, [#allocation6], [#allocation5]
    $region9: #{tpu_custom_call.1} parent=1 // pred_fallthru
      _
    // Predicated region
    $region10: #{tpu_custom_call.1} parent=1 // pred_check
      _
    $region11: #{tpu_custom_call.1} parent=1 // pred_check_branch
      %30 = sbr.rel (0) target = $region13
    $region12: #{tpu_custom_call.1} parent=1 // pred_region
      _
    $region13: #{tpu_custom_call.1} parent=1 // pred_fallthru
      _
    // Predicated region
    $region14: #{tpu_custom_call.1} parent=1 // pred_check
      _
    $region15: #{tpu_custom_call.1} parent=1 // pred_check_branch
      %32 = sbr.rel (0) target = $region17
    $region16: #{tpu_custom_call.1} parent=1 // pred_region
      %33 = dma.done [#allocation4], 32
    $region17: #{tpu_custom_call.1} parent=1 // pred_fallthru
      _
    // Predicated region
    $region18: #{tpu_custom_call.1} parent=1 // pred_check
      _
    $region19: #{tpu_custom_call.1} parent=1 // pred_check_branch
      %35 = sbr.rel (0) target = $region21
    $region20: #{tpu_custom_call.1} parent=1 // pred_region
      %36 = dma.done [#allocation5], 16
    $region21: #{tpu_custom_call.1} parent=1 // pred_fallthru
      _
    %37 = sfence
    %v38 = vld [vmem:[%s2] sm:$0x1]
    %v39 = vld [vmem:[%s2 + $0x1] sm:$0x1]
    %s40 = sld [smem:[#allocation2]]
    %v41 = vstv %s40
    %v42 = vmul.f32 %v38, %v41
    %s43 = sld [smem:[#allocation2 + $0x1]]
    %v44 = vstv %s43
    %v45 = vmul.f32 %v39, %v44
    %v46 = vadd.f32 %v42, %v45
    %s47 = sld [smem:[#allocation6]]
    %v48 = vstv %s47
    %v49 = vadd.f32 %v46, %v48
    %s50 = sld [smem:[#allocation2 + $0x80]]
    %v51 = vstv %s50
    %v52 = vmul.f32 %v38, %v51
    %s53 = sld [smem:[#allocation2 + $0x81]]
    %v54 = vstv %s53
    %v55 = vmul.f32 %v39, %v54
    %v56 = vadd.f32 %v52, %v55
    %s57 = sld [smem:[#allocation6 + $0x1]]
    %v58 = vstv %s57
    %v59 = vadd.f32 %v56, %v58
    %v60 = vxor.u32 %v49, 2147483648
    %v61 = vmul.f32 %v60, 1.442695
    %v62 = vpow.pop %v61
    %v63 = vadd.f32 %v62, 1.0
    %v64 = vrcp.pop %v63
    %v65 = vmul.f32 1.0, %v64
    %vm66 = vcmask 24576
    %67 = vst.msk [vmem:[#allocation7] sm:$0x1] %vm66, %v65
    %v68 = vxor.u32 %v59, 2147483648
    %v69 = vmul.f32 %v68, 1.442695
    %v70 = vpow.pop %v69
    %v71 = vadd.f32 %v70, 1.0
    %v72 = vrcp.pop %v71
    %v73 = vmul.f32 1.0, %v72
    %74 = vst.msk [vmem:[#allocation7 + $0x1] sm:$0x1] %vm66, %v73
    // Predicated region
    $region22: #{tpu_custom_call.1} parent=1 // pred_check
      _
    $region23: #{tpu_custom_call.1} parent=1 // pred_check_branch
      %76 = sbr.rel (0) target = $region25
    $region24: #{tpu_custom_call.1} parent=1 // pred_region
      %s78 = ssub.s32 32, 32
      %79 = vsyncadd [#allocation3], %s78
      %s81 = sshll.u32 [#allocation7], 4
      %s82 = int_to_ptr.vmem [resolvable:$true] %s81
      %84 = dma.vmem_to_hbm [thread:$0]  %s82, 32, %s3, [#allocation3]
    $region25: #{tpu_custom_call.1} parent=1 // pred_fallthru
      _
    // Predicated region
    $region26: #{tpu_custom_call.1} parent=1 // pred_check
      _
    $region27: #{tpu_custom_call.1} parent=1 // pred_check_branch
      %86 = sbr.rel (0) target = $region29
    $region28: #{tpu_custom_call.1} parent=1 // pred_region
      %87 = dma.done [#allocation3], 32
    $region29: #{tpu_custom_call.1} parent=1 // pred_fallthru
      _
    %88 = vsyncpa [#allocation3], 1
    %89 = vsyncpa [#allocation4], 1
    %90 = vsyncpa [#allocation5], 1

</llo_original>
